<compile_context>
chip_gen: v5e
topology: v5e:2x2
jax: 0.10.0
libtpu: 0.0.40
codegen_flags: <defaults>
</compile_context>

<pallas_src>
import math

import numpy as np
import jax
import jax.numpy as jnp
from jax.experimental import pallas as pl
from jax.experimental.pallas import tpu as pltpu

_LANE = 128


def _round_up(x, m):
    return ((x + m - 1) // m) * m


def _halve(t):
    return max(_LANE, ((t // 2) // _LANE) * _LANE)


def _pad_last2(a, rows, cols):
    """Zero-pad the last two dims of `a` to (rows, cols); no-op if aligned."""
    pr = rows - a.shape[-2]
    pc = cols - a.shape[-1]
    if pr == 0 and pc == 0:
        return a
    cfg = [(0, 0)] * (a.ndim - 2) + [(0, pr), (0, pc)]
    return jnp.pad(a, cfg)


# ---------------------------------------------------------------------------
# Aggregation kernel:  Z[b] = A[b] @ Y[b]  (optionally fused:  (A@Y) @ W + b)
# grid = (B, Np//tm, Np//tk); k (last axis) is the contraction axis.
# ---------------------------------------------------------------------------
def _make_agg_kernel(*, fused, has_bias, use_scratch, resident_y, tk,
                     compute_dtype):
    cdt = compute_dtype

    def kernel(*refs):
        idx = 0
        adj_ref = refs[idx]; idx += 1
        y_ref = refs[idx]; idx += 1
        w_ref = None
        if fused:
            w_ref = refs[idx]; idx += 1
        b_ref = None
        if has_bias:
            b_ref = refs[idx]; idx += 1
        o_ref = refs[idx]; idx += 1
        acc_ref = refs[idx] if use_scratch else None

        k = pl.program_id(2)
        nk = pl.num_programs(2)

        # In-kernel cast of the adjacency tile (keeps adj f32 in HBM).
        a_tile = adj_ref[0]
        if a_tile.dtype != cdt:
            a_tile = a_tile.astype(cdt)

        if resident_y:
            start = pl.multiple_of(k * tk, tk)
            y_tile = y_ref[0, pl.ds(start, tk), :]
        else:
            y_tile = y_ref[0]
        if y_tile.dtype != cdt:
            y_tile = y_tile.astype(cdt)

        part = jnp.dot(a_tile, y_tile, preferred_element_type=jnp.float32)

        if use_scratch:
            @pl.when(k == 0)
            def _():
                acc_ref[...] = jnp.zeros_like(acc_ref)

            acc_ref[...] += part

            @pl.when(k == nk - 1)
            def _():
                acc = acc_ref[...]
                if fused:
                    acc = jnp.dot(acc.astype(cdt), w_ref[...],
                                  preferred_element_type=jnp.float32)
                if has_bias:
                    acc = acc + b_ref[...]
                o_ref[0] = acc.astype(o_ref.dtype)
        else:
            # f32 output: accumulate directly into the resident output block.
            @pl.when(k == 0)
            def _():
                o_ref[...] = jnp.zeros_like(o_ref)

            o_ref[0] += part

            if has_bias:
                @pl.when(k == nk - 1)
                def _():
                    o_ref[0] = o_ref[0] + b_ref[...]

    return kernel


def _aggregate(adj_p, y_p, *, tm, tk, w_p=None, bias_p=None, out_dtype,
               compute_dtype, resident_y, vmem_limit):
    B, Np, _ = adj_p.shape
    Fy = y_p.shape[-1]
    fused = w_p is not None
    has_bias = bias_p is not None
    Fo = w_p.shape[1] if fused else Fy
    use_scratch = fused or (np.dtype(out_dtype) != np.dtype(np.float32))

    grid = (B, Np // tm, Np // tk)

    adj_spec = pl.BlockSpec((1, tm, tk), lambda b, i, k: (b, i, k))
    if resident_y:
        # Whole per-batch Y stays VMEM-resident; kernel slices the k-tile.
        y_spec = pl.BlockSpec((1, Np, Fy), lambda b, i, k: (b, 0, 0))
    else:
        y_spec = pl.BlockSpec((1, tk, Fy), lambda b, i, k: (b, k, 0))

    in_specs = [adj_spec, y_spec]
    operands = [adj_p, y_p]
    if fused:
        in_specs.append(pl.BlockSpec((w_p.shape[0], Fo), lambda b, i, k: (0, 0)))
        operands.append(w_p)
    if has_bias:
        in_specs.append(pl.BlockSpec((1, Fo), lambda b, i, k: (0, 0)))
        operands.append(bias_p)

    o_spec = pl.BlockSpec((1, tm, Fo), lambda b, i, k: (b, i, 0))
    scratch = [pltpu.VMEM((tm, Fy), jnp.float32)] if use_scratch else []

    flops = 2 * B * Np * Np * Fy + (2 * B * Np * Fy * Fo if fused else 0)
    bytes_accessed = (B * Np * Np * adj_p.dtype.itemsize
                      + B * Np * Fy * y_p.dtype.itemsize
                      + B * Np * Fo * np.dtype(out_dtype).itemsize
                      + (w_p.size * w_p.dtype.itemsize if fused else 0)
                      + (bias_p.size * bias_p.dtype.itemsize if has_bias else 0))

    kernel = _make_agg_kernel(fused=fused, has_bias=has_bias,
                              use_scratch=use_scratch, resident_y=resident_y,
                              tk=tk, compute_dtype=compute_dtype)

    return pl.pallas_call(
        kernel,
        out_shape=jax.ShapeDtypeStruct((B, Np, Fo), out_dtype),
        grid_spec=pltpu.PrefetchScalarGridSpec(
            num_scalar_prefetch=0, grid=grid,
            in_specs=in_specs, out_specs=o_spec, scratch_shapes=scratch),
        compiler_params=pltpu.CompilerParams(
            dimension_semantics=("parallel", "parallel", "arbitrary"),
            vmem_limit_bytes=int(vmem_limit)),
        cost_estimate=pl.CostEstimate(flops=int(flops), transcendentals=0,
                                      bytes_accessed=int(bytes_accessed)),
    )(*operands)


# ---------------------------------------------------------------------------
# Projection kernel:  O[b] = Y[b] @ W  (+ bias);  W/bias VMEM-resident.
# ---------------------------------------------------------------------------
def _make_proj_kernel(*, has_bias, compute_dtype):
    cdt = compute_dtype

    def kernel(*refs):
        idx = 0
        y_ref = refs[idx]; idx += 1
        w_ref = refs[idx]; idx += 1
        b_ref = None
        if has_bias:
            b_ref = refs[idx]; idx += 1
        o_ref = refs[idx]

        y = y_ref[0]
        if y.dtype != cdt:
            y = y.astype(cdt)
        out = jnp.dot(y, w_ref[...], preferred_element_type=jnp.float32)
        if has_bias:
            out = out + b_ref[...]
        o_ref[0] = out.astype(o_ref.dtype)

    return kernel


def _project(y_p, w_p, *, tm, bias_p=None, out_dtype, compute_dtype,
             vmem_limit):
    B, Np, Fin = y_p.shape
    Fout = w_p.shape[1]
    has_bias = bias_p is not None
    grid = (B, Np // tm)

    in_specs = [pl.BlockSpec((1, tm, Fin), lambda b, i: (b, i, 0)),
                pl.BlockSpec((Fin, Fout), lambda b, i: (0, 0))]
    operands = [y_p, w_p]
    if has_bias:
        in_specs.append(pl.BlockSpec((1, Fout), lambda b, i: (0, 0)))
        operands.append(bias_p)
    o_spec = pl.BlockSpec((1, tm, Fout), lambda b, i: (b, i, 0))

    flops = 2 * B * Np * Fin * Fout
    bytes_accessed = (B * Np * Fin * y_p.dtype.itemsize
                      + Fin * Fout * w_p.dtype.itemsize
                      + B * Np * Fout * np.dtype(out_dtype).itemsize
                      + (bias_p.size * bias_p.dtype.itemsize if has_bias else 0))

    kernel = _make_proj_kernel(has_bias=has_bias, compute_dtype=compute_dtype)

    return pl.pallas_call(
        kernel,
        out_shape=jax.ShapeDtypeStruct((B, Np, Fout), out_dtype),
        grid_spec=pltpu.PrefetchScalarGridSpec(
            num_scalar_prefetch=0, grid=grid,
            in_specs=in_specs, out_specs=o_spec),
        compiler_params=pltpu.CompilerParams(
            dimension_semantics=("parallel", "parallel"),
            vmem_limit_bytes=int(vmem_limit)),
        cost_estimate=pl.CostEstimate(flops=int(flops), transcendentals=0,
                                      bytes_accessed=int(bytes_accessed)),
    )(*operands)


# ---------------------------------------------------------------------------
# Public wrapper: GraphConvolution.forward
# ---------------------------------------------------------------------------
def graph_convolution(x, adj, weight, bias=None, *, tile_m=512, tile_k=512,
                      compute_dtype=None,
                      vmem_budget_bytes=20 * 1024 * 1024):
    """Pallas implementation of GraphConvolution.forward.

    x:      (B, N, F_in)     adj: (B, N, N)     weight: (F_in, F_out)
    bias:   (1, 1, F_out) or None
    compute_dtype: dtype fed to the MXU (e.g. jnp.bfloat16); accumulation is
                   always f32.  None -> x.dtype.
    returns (B, N, F_out) in x.dtype.
    """
    B, N, F_in = x.shape
    F_out = weight.shape[1]
    out_dtype = np.dtype(x.dtype)
    cdt = np.dtype(compute_dtype) if compute_dtype is not None else out_dtype

    Fin_p = _round_up(F_in, _LANE)
    Fout_p = _round_up(F_out, _LANE)

    # --- node-dim tiles: multiples of 128 with tk | tm ----------------------
    base = _round_up(N, _LANE)
    tm = max(_LANE, min((int(tile_m) // _LANE) * _LANE, base))
    tk = max(_LANE, min((int(tile_k) // _LANE) * _LANE, tm))
    tm = (tm // tk) * tk

    adj_isz = adj.dtype.itemsize
    x_isz = x.dtype.itemsize
    cdt_isz = cdt.itemsize
    out_isz = out_dtype.itemsize

    order1 = F_in >= F_out
    if order1:
        # out = A @ (X @ W)  (smaller feature dim rides the N^2 matmul)
        fused = False
        Fy, Fo = Fout_p, Fout_p
        y_isz = cdt_isz
        agg_out_dtype = out_dtype
        agg_has_bias = bias is not None
    else:
        # out = (A @ X) @ W, with the @W fused into the aggregation finalize
        fused = 2 * Fin_p * Fout_p * cdt_isz <= vmem_budget_bytes // 2
        Fy = Fin_p
        Fo = Fout_p if fused else Fin_p
        y_isz = x_isz
        agg_out_dtype = out_dtype if fused else cdt
        agg_has_bias = (bias is not None) and fused
    use_scratch = fused or (np.dtype(agg_out_dtype) != np.dtype(np.float32))
    agg_out_isz = np.dtype(agg_out_dtype).itemsize

    def agg_est(tm_, tk_, resident_):
        Np_ = _round_up(N, tm_)
        v = 2 * tm_ * tk_ * adj_isz                                # adj tiles
        v += (2 * Np_ * Fy * y_isz) if resident_ else (2 * tk_ * Fy * y_isz)
        v += 2 * tm_ * Fo * agg_out_isz                            # out tiles
        if fused:
            v += 2 * Fin_p * Fout_p * cdt_isz                      # resident W
        if agg_has_bias:
            v += 2 * Fout_p * 4
        if use_scratch:
            v += tm_ * Fy * 4                                      # f32 acc
        return v, Np_

    Np0 = _round_up(N, tm)
    resident_y = (Np0 > tm) and (
        2 * Np0 * Fy * y_isz <= max(vmem_budget_bytes // 4, 4 * 1024 * 1024))

    # Shrink tiles / drop resident-Y until we fit the VMEM budget (v7x-safe).
    while True:
        est, Np = agg_est(tm, tk, resident_y)
        if est <= vmem_budget_bytes:
            break
        if resident_y:
            resident_y = False
        elif tk > _LANE:
            tk = _halve(tk)
            tm = max(tk, (tm // tk) * tk)
        elif tm > _LANE:
            tm = _halve(tm)
        else:
            break
    agg_vmem_limit = min(max(2 * est, 32 * 1024 * 1024), 64 * 1024 * 1024)

    # --- padding (lane-dense features; copies skipped when aligned) ---------
    # Zero padding is semantically neutral: padded adj rows/cols contract with
    # zeros, padded feature cols are sliced off at the end.
    x_p = _pad_last2(x, Np, Fin_p)          # original dtype; cast in-kernel
    adj_p = _pad_last2(adj, Np, Np)         # original dtype; cast in-kernel
    w_p = _pad_last2(weight, Fin_p, Fout_p).astype(cdt)
    b_p = None
    if bias is not None:
        b2 = jnp.reshape(bias, (1, F_out)).astype(jnp.float32)
        b_p = b2 if Fout_p == F_out else jnp.pad(b2, ((0, 0), (0, Fout_p - F_out)))

    # --- projection row tile (decoupled; W stays resident) ------------------
    def _proj_fits(tp_):
        v = 2 * tp_ * Fin_p * max(x_isz, cdt_isz)
        v += 2 * tp_ * Fout_p * max(out_isz, cdt_isz)
        v += 2 * Fin_p * Fout_p * cdt_isz
        v += 2 * Fout_p * 4
        return v <= vmem_budget_bytes

    def _proj_tile():
        tp = tm
        while (tp * 2 <= min(2048, Np) and Np % (tp * 2) == 0
               and _proj_fits(tp * 2)):
            tp *= 2
        return tp

    if order1:
        support = _project(x_p, w_p, tm=_proj_tile(), bias_p=None,
                           out_dtype=cdt, compute_dtype=cdt,
                           vmem_limit=32 * 1024 * 1024)
        out_p = _aggregate(adj_p, support, tm=tm, tk=tk, bias_p=b_p,
                           out_dtype=out_dtype, compute_dtype=cdt,
                           resident_y=resident_y, vmem_limit=agg_vmem_limit)
    elif fused:
        out_p = _aggregate(adj_p, x_p, tm=tm, tk=tk, w_p=w_p, bias_p=b_p,
                           out_dtype=out_dtype, compute_dtype=cdt,
                           resident_y=resident_y, vmem_limit=agg_vmem_limit)
    else:
        # W too large to keep resident: two-stage order-2 fallback.
        agg = _aggregate(adj_p, x_p, tm=tm, tk=tk, out_dtype=cdt,
                         compute_dtype=cdt, resident_y=resident_y,
                         vmem_limit=agg_vmem_limit)
        out_p = _project(agg, w_p, tm=_proj_tile(), bias_p=b_p,
                         out_dtype=out_dtype, compute_dtype=cdt,
                         vmem_limit=32 * 1024 * 1024)

    if Np == N and Fout_p == F_out:
        return out_p
    return out_p[:, :N, :F_out]


def init_params(key, in_features, out_features, bias=False):
    """Deterministic init mirroring GraphConvolution.reset_parameters."""
    stdv = 1.0 / math.sqrt(out_features)
    k_w, k_b = jax.random.split(key)
    weight = jax.random.uniform(
        k_w, (in_features, out_features), jnp.float32, minval=-stdv, maxval=stdv)
    b = None
    if bias:
        b = jax.random.uniform(
            k_b, (1, 1, out_features), jnp.float32, minval=-stdv, maxval=stdv)
    return weight, b


if __name__ == "__main__":
    key = jax.random.PRNGKey(0)

    def reference(x, adj, w, b):
        sup = jnp.matmul(x, w, precision=jax.lax.Precision.HIGHEST)
        out = jnp.matmul(adj, sup, precision=jax.lax.Precision.HIGHEST)
        return out if b is None else out + b

    def make_inputs(k, B, N, F_in, F_out, use_bias):
        k_x, k_adj, k_p = jax.random.split(k, 3)
        x = jax.random.normal(k_x, (B, N, F_in), jnp.float32)
        adj_raw = jax.random.uniform(k_adj, (B, N, N), jnp.float32)
        adj = adj_raw / jnp.sum(adj_raw, axis=-1, keepdims=True)
        w, b = init_params(k_p, F_in, F_out, bias=use_bias)
        return x, adj, w, b

    cases = [
        # (B, N, F_in, F_out, bias, tile_m, tile_k)
        (2, 8, 16, 32, False, 512, 512),   # order-2 fused, no bias
        (2, 8, 16, 32, True, 512, 512),    # order-2 fused, bias
        (2, 8, 32, 16, False, 512, 512),   # order-1 (project then aggregate)
        (2, 8, 32, 16, True, 512, 512),    # order-1, bias (direct f32 accum)
        (1, 200, 48, 64, True, 128, 128),  # multi-tile N: resident-Y + fused
        (1, 200, 64, 48, True, 128, 128),  # multi-tile N: resident-Y, order-1
    ]

    for idx, (B, N, F_in, F_out, use_bias, tile_m, tile_k) in enumerate(cases):
        key, sub = jax.random.split(key)
        x, adj, w, b = make_inputs(sub, B, N, F_in, F_out, use_bias)
        ref = reference(x, adj, w, b)

        # f32 compute path
        out = graph_convolution(x, adj, w, b, tile_m=tile_m, tile_k=tile_k)
        out = jax.block_until_ready(out)
        assert out.shape == (B, N, F_out)
        assert jnp.allclose(out, ref, atol=2e-3, rtol=2e-3), \
            f"f32 mismatch (case {idx})"

        # bf16 MXU path (adj cast in-kernel), looser tolerance
        out_bf = graph_convolution(x, adj, w, b, tile_m=tile_m, tile_k=tile_k,
                                   compute_dtype=jnp.bfloat16)
        out_bf = jax.block_until_ready(out_bf)
        assert jnp.allclose(out_bf, ref, atol=1e-1, rtol=1e-1), \
            f"bf16 mismatch (case {idx})"

    # bf16 activations end-to-end (exercises the scratch-accumulator finalize)
    x, adj, w, b = make_inputs(jax.random.PRNGKey(42), 2, 8, 32, 16, True)
    x16 = x.astype(jnp.bfloat16)
    ref16 = reference(x16.astype(jnp.float32), adj, w, b)
    out16 = jax.block_until_ready(graph_convolution(x16, adj, w, b))
    assert out16.dtype == jnp.bfloat16
    assert jnp.allclose(out16.astype(jnp.float32), ref16, atol=1e-1, rtol=1e-1), \
        "bf16-activation mismatch"

    print("KERNEL_OK")
</pallas_src>

<mosaic_0001>
module attributes {stable_mosaic.version = 11 : i64} {
  func.func @kernel(%arg0: i32, %arg1: i32, %arg2: i32, %arg3: memref<1x128x128xf32, #tpu.memory_space<vmem>>, %arg4: memref<1x128x128xf32, #tpu.memory_space<vmem>>, %arg5: memref<128x128xf32, #tpu.memory_space<vmem>>, %arg6: memref<1x128x128xf32, #tpu.memory_space<vmem>>, %arg7: memref<128x128xf32, #tpu.memory_space<vmem>>) attributes {dimension_semantics = [#tpu.dimension_semantics<parallel>, #tpu.dimension_semantics<parallel>, #tpu.dimension_semantics<arbitrary>], iteration_bounds = array<i64: 2, 1, 1>, scalar_prefetch = 0 : i64, scratch_operands = 1 : i64, tpu.core_type = #tpu.core_type<tc>, window_params = [{transform_indices = @transform_0, window_bounds = array<i64: 1, 128, 128>}, {transform_indices = @transform_1, window_bounds = array<i64: 1, 128, 128>}, {pipeline_mode = #tpu.pipeline_mode<synchronous>, transform_indices = @transform_2, window_bounds = array<i64: 128, 128>}, {transform_indices = @transform_3, window_bounds = array<i64: 1, 128, 128>}]} {
    %c0 = arith.constant 0 : index
    %c0_0 = arith.constant 0 : index
    %c0_1 = arith.constant 0 : index
    %0 = vector.load %arg3[%c0, %c0_0, %c0_1] : memref<1x128x128xf32, #tpu.memory_space<vmem>>, vector<1x128x128xf32>
    %1 = vector.shape_cast %0 : vector<1x128x128xf32> to vector<128x128xf32>
    %c0_2 = arith.constant 0 : index
    %c0_3 = arith.constant 0 : index
    %c0_4 = arith.constant 0 : index
    %2 = vector.load %arg4[%c0_2, %c0_3, %c0_4] : memref<1x128x128xf32, #tpu.memory_space<vmem>>, vector<1x128x128xf32>
    %3 = vector.shape_cast %2 : vector<1x128x128xf32> to vector<128x128xf32>
    %cst = arith.constant dense<0.000000e+00> : vector<128x128xf32>
    %4 = tpu.matmul %1, %3, %cst {dimension_numbers = #tpu.dot_dimension_numbers<[1], [0], [0], [1], [0, 0, 1, 1], [], []>} : vector<128x128xf32>, vector<128x128xf32>, vector<128x128xf32> -> vector<128x128xf32>
    %c0_i32 = arith.constant 0 : i32
    %5 = arith.cmpi eq, %arg2, %c0_i32 : i32
    %6 = arith.extui %5 : i1 to i32
    %c0_i32_5 = arith.constant 0 : i32
    %7 = arith.cmpi ne, %6, %c0_i32_5 : i32
    scf.if %7 {
      %cst_12 = arith.constant 0.000000e+00 : f32
      %14 = vector.broadcast %cst_12 : f32 to vector<128x128xf32>
      %c0_13 = arith.constant 0 : index
      %c0_14 = arith.constant 0 : index
      %15 = vector.load %arg7[%c0_13, %c0_14] : memref<128x128xf32, #tpu.memory_space<vmem>>, vector<128x128xf32>
      tpu.vector_store %arg7[%c0_13, %c0_14], %14 {strides = array<i32>} : memref<128x128xf32, #tpu.memory_space<vmem>>, vector<128x128xf32>,
    } else {
    }
    %c0_6 = arith.constant 0 : index
    %c0_7 = arith.constant 0 : index
    %8 = vector.load %arg7[%c0_6, %c0_7] : memref<128x128xf32, #tpu.memory_space<vmem>>, vector<128x128xf32>
    %9 = arith.addf %8, %4 : vector<128x128xf32>
    %c0_8 = arith.constant 0 : index
    %c0_9 = arith.constant 0 : index
    %10 = vector.load %arg7[%c0_8, %c0_9] : memref<128x128xf32, #tpu.memory_space<vmem>>, vector<128x128xf32>
    tpu.vector_store %arg7[%c0_8, %c0_9], %9 {strides = array<i32>} : memref<128x128xf32, #tpu.memory_space<vmem>>, vector<128x128xf32>,
    %c0_i32_10 = arith.constant 0 : i32
    %11 = arith.cmpi eq, %arg2, %c0_i32_10 : i32
    %12 = arith.extui %11 : i1 to i32
    %c0_i32_11 = arith.constant 0 : i32
    %13 = arith.cmpi ne, %12, %c0_i32_11 : i32
    scf.if %13 {
      %c0_12 = arith.constant 0 : index
      %c0_13 = arith.constant 0 : index
      %14 = vector.load %arg7[%c0_12, %c0_13] : memref<128x128xf32, #tpu.memory_space<vmem>>, vector<128x128xf32>
      %c0_14 = arith.constant 0 : index
      %c0_15 = arith.constant 0 : index
      %15 = vector.load %arg5[%c0_14, %c0_15] : memref<128x128xf32, #tpu.memory_space<vmem>>, vector<128x128xf32>
      %cst_16 = arith.constant dense<0.000000e+00> : vector<128x128xf32>
      %16 = tpu.matmul %14, %15, %cst_16 {dimension_numbers = #tpu.dot_dimension_numbers<[1], [0], [0], [1], [0, 0, 1, 1], [], []>} : vector<128x128xf32>, vector<128x128xf32>, vector<128x128xf32> -> vector<128x128xf32>
      %c0_17 = arith.constant 0 : index
      %c0_18 = arith.constant 0 : index
      %c0_19 = arith.constant 0 : index
      %17 = vector.load %arg6[%c0_17, %c0_18, %c0_19] : memref<1x128x128xf32, #tpu.memory_space<vmem>>, vector<1x128x128xf32>
      %18 = vector.shape_cast %17 : vector<1x128x128xf32> to vector<128x128xf32>
      %19 = vector.shape_cast %16 : vector<128x128xf32> to vector<1x128x128xf32>
      tpu.vector_store %arg6[%c0_17, %c0_18, %c0_19], %19 {strides = array<i32>} : memref<1x128x128xf32, #tpu.memory_space<vmem>>, vector<1x128x128xf32>,
    } else {
    }
    return
  }
  func.func @transform_0(%arg0: i32, %arg1: i32, %arg2: i32) -> (i32, i32, i32) {
    %c0_i32 = arith.constant 0 : i32
    return %arg0, %arg1, %arg2 : i32, i32, i32
  }
  func.func @transform_1(%arg0: i32, %arg1: i32, %arg2: i32) -> (i32, i32, i32) {
    %c0_i32 = arith.constant 0 : i32
    %c0_i32_0 = arith.constant 0 : i32
    return %arg0, %arg2, %c0_i32 : i32, i32, i32
  }
  func.func @transform_2(%arg0: i32, %arg1: i32, %arg2: i32) -> (i32, i32) {
    %c0_i32 = arith.constant 0 : i32
    %c0_i32_0 = arith.constant 0 : i32
    %c0_i32_1 = arith.constant 0 : i32
    return %c0_i32, %c0_i32_0 : i32, i32
  }
  func.func @transform_3(%arg0: i32, %arg1: i32, %arg2: i32) -> (i32, i32, i32) {
    %c0_i32 = arith.constant 0 : i32
    %c0_i32_0 = arith.constant 0 : i32
    return %arg0, %arg1, %c0_i32 : i32, i32, i32
  }
}

</mosaic_0001>

<llo_original>
// kernel: tpu_custom_call.1
$region0: #{tpu_custom_call.1}
  #allocation0 [shape = 'u32[]', space=smem, size = 0x4, offset = 0x4, fixed_abs, tag = 'smem constant byte address 0x4 - core index']
  #allocation1 [shape = 'u32[72,128]{1,0:T(1,128)}', space=vmem, size = 0x9000, scoped, tag = 'internal scratch']
  #allocation2 [shape = 'f32[128,128]{1,0:T(8,128)}', space=vmem, size = 0x10000, scoped, tag = 'scratch operand']
  %s0 = inlined_call_operand.hbm [shape: f32[2,128,128], index: 0, kind: input, shape index: {}]
  %s1 = inlined_call_operand.hbm [shape: f32[2,128,128], index: 1, kind: input, shape index: {}]
  %s2 = inlined_call_operand.hbm [shape: f32[128,128], index: 2, kind: input, shape index: {}]
  %s3 = inlined_call_operand.hbm [shape: f32[2,128,128], index: 3, kind: output, shape index: {}]
  %s4 = sld [smem:[#allocation0]]
  $region65: #{tpu_custom_call.1} parent=0
    _
  %s6 = ssub.s32 1, %s4
  %s7 = scalar_select 0, %s6, %s4
  $region1: #{tpu_custom_call.1} parent=0
    #allocation3 [shape = 'u8[131072]{0}', space=vmem, size = 0x20000, scoped, tag = 'input window, operand 0']
    #allocation4 [shape = 's32[2]{0}', space=sflag, size = 0x8, scoped, tag = 'scoped memory for tpu_custom_call.1']
    #allocation5 [shape = 's32[2]{0}', space=sflag, size = 0x8, scoped, tag = 'scoped memory for tpu_custom_call.1']
    #allocation6 [shape = 'u8[131072]{0}', space=vmem, size = 0x20000, scoped, tag = 'input window, operand 1']
    #allocation7 [shape = 's32[2]{0}', space=sflag, size = 0x8, scoped, tag = 'scoped memory for tpu_custom_call.1']
    #allocation8 [shape = 'u8[65536]{0}', space=vmem, size = 0x10000, scoped, tag = 'input window, operand 2, single buffered']
    #allocation9 [shape = 'u8[131072]{0}', space=vmem, size = 0x20000, scoped, tag = 'output window, operand 0']
    %8 = vsyncpa [#allocation4], 0
    %s9 = scalar_lea.sflag [#allocation4], 1
    %10 = vsyncpa %s9, 0
    %11 = vsyncpa [#allocation7], 0
    %s12 = scalar_lea.sflag [#allocation7], 1
    %13 = vsyncpa %s12, 0
    %14 = vsyncpa [#allocation5], 0
    %s15 = scalar_lea.sflag [#allocation5], 1
    %16 = vsyncpa %s15, 0
    loop: start=0, step=1, limit=4
    $region2: #{tpu_custom_call.1} parent=1 // loop_pre_header
      _
    $region3: #{tpu_custom_call.1} parent=1 // loop_header
      %s18 = sphi 0, %s22
      %p19 = scmp.ge.s32.totalorder %s18, 4
      %s25 = sphi 0, %s44
      %s26 = sphi 0, %s40
      %s27 = sphi 0, %s36
      %s28 = sphi 0, %s25
      %s29 = sphi 0, %s26
      %s30 = sphi 0, %s27
      %s31 = sphi 0, %s28
      %s32 = sphi 0, %s29
      %s33 = sphi 0, %s30
      %s51 = sphi 0, %s53
      %s54 = sphi 0, %s51
      %s55 = sphi 0, %s54
      %s71 = sphi 0, %s55
      %s79 = sphi 0, %s81
      %s82 = sphi 0, %s79
      %s83 = sphi 0, %s82
      %s99 = sphi 0, %s83
      %s103 = sphi 0, %s103
      %s105 = sphi 0, %s103
      %s106 = sphi 0, %s105
      %s120 = sphi 0, %s106
      %s128 = sphi 0, %s130
      %s131 = sphi 0, %s128
      %s132 = sphi 0, %s131
      %s148 = sphi 0, %s132
    $region4: #{tpu_custom_call.1} parent=1 // loop_header_branch
      %21 = sbr.rel (%p19) target = $region8
    $region5: #{tpu_custom_call.1} parent=1 // loop_body
      %s23 = ssub.s32 %s18, 1
      %s24 = ssub.s32 %s18, 2
      %s34 = sadd.s32 1, %s27
      %p35 = scmp.ge.s32.totalorder %s34, 1
      %s36 = scalar_select %p35, 0, %s34
      %s37 = sadd.s32 1, %s26
      %s38 = scalar_select %p35, %s37, %s26
      %p39 = scmp.ge.s32.totalorder %s38, 1
      %s40 = scalar_select %p39, 0, %s38
      %s41 = sadd.s32 1, %s25
      %s42 = scalar_select %p39, %s41, %s25
      %p43 = scmp.ge.s32.totalorder %s42, 2
      %s44 = scalar_select %p43, 0, %s42
      %s45 = ssub.s32 %s25, %s44
      %s46 = ssub.s32 %s26, %s40
      %s47 = sor.u32 %s45, %s46
      %s48 = ssub.s32 %s27, %s36
      %s49 = sor.u32 %s47, %s48
      %p50 = scmp.eq.s32.totalorder %s49, 0
      %s52 = sadd.s32 %s51, 1
      %s53 = scalar_select %p50, %s51, %s52
      %p56 = pneg %p50
      %p57 = scmp.eq.s32.totalorder %s18, 1
      %p58 = por %p56, %p57
      %p59 = scmp.ne.s32.totalorder %s51, %s54
      %p60 = scmp.eq.s32.totalorder %s18, 0
      %p61 = por %p59, %p60
      %p62 = scmp.ne.s32.totalorder %s51, %s54
      %p63 = scmp.eq.s32.totalorder %s23, 1
      %p64 = por %p62, %p63
      %p65 = scmp.ne.s32.totalorder %s54, %s55
      %p66 = scmp.eq.s32.totalorder %s23, 0
      %p67 = por %p65, %p66
      %p68 = scmp.ne.s32.totalorder %s54, %s55
      %p69 = scmp.eq.s32.totalorder %s24, 1
      %p70 = por %p68, %p69
      %p72 = scmp.ne.s32.totalorder %s55, %s71
      %p73 = scmp.eq.s32.totalorder %s24, 0
      %p74 = por %p72, %p73
      %s75 = ssub.s32 %s25, %s44
      %s76 = ssub.s32 %s27, %s36
      %s77 = sor.u32 %s75, %s76
      %p78 = scmp.eq.s32.totalorder %s77, 0
      %s80 = sadd.s32 %s79, 1
      %s81 = scalar_select %p78, %s79, %s80
      %p84 = pneg %p78
      %p85 = scmp.eq.s32.totalorder %s18, 1
      %p86 = por %p84, %p85
      %p87 = scmp.ne.s32.totalorder %s79, %s82
      %p88 = scmp.eq.s32.totalorder %s18, 0
      %p89 = por %p87, %p88
      %p90 = scmp.ne.s32.totalorder %s79, %s82
      %p91 = scmp.eq.s32.totalorder %s23, 1
      %p92 = por %p90, %p91
      %p93 = scmp.ne.s32.totalorder %s82, %s83
      %p94 = scmp.eq.s32.totalorder %s23, 0
      %p95 = por %p93, %p94
      %p96 = scmp.ne.s32.totalorder %s82, %s83
      %p97 = scmp.eq.s32.totalorder %s24, 1
      %p98 = por %p96, %p97
      %p100 = scmp.ne.s32.totalorder %s83, %s99
      %p101 = scmp.eq.s32.totalorder %s24, 0
      %p102 = por %p100, %p101
      %s104 = sadd.s32 %s103, 1
      %p107 = scmp.eq.s32.totalorder %s18, 1
      %p108 = scmp.ne.s32.totalorder %s103, %s105
      %p109 = scmp.eq.s32.totalorder %s18, 0
      %p110 = por %p108, %p109
      %p111 = scmp.ne.s32.totalorder %s103, %s105
      %p112 = scmp.eq.s32.totalorder %s23, 1
      %p113 = por %p111, %p112
      %p114 = scmp.ne.s32.totalorder %s105, %s106
      %p115 = scmp.eq.s32.totalorder %s23, 0
      %p116 = por %p114, %p115
      %p117 = scmp.ne.s32.totalorder %s105, %s106
      %p118 = scmp.eq.s32.totalorder %s24, 1
      %p119 = por %p117, %p118
      %p121 = scmp.ne.s32.totalorder %s106, %s120
      %p122 = scmp.eq.s32.totalorder %s24, 0
      %p123 = por %p121, %p122
      %s124 = ssub.s32 %s25, %s44
      %s125 = ssub.s32 %s26, %s40
      %s126 = sor.u32 %s124, %s125
      %p127 = scmp.eq.s32.totalorder %s126, 0
      %s129 = sadd.s32 %s128, 1
      %s130 = scalar_select %p127, %s128, %s129
      %p133 = pneg %p127
      %p134 = scmp.eq.s32.totalorder %s18, 1
      %p135 = por %p133, %p134
      %p136 = scmp.ne.s32.totalorder %s128, %s131
      %p137 = scmp.eq.s32.totalorder %s18, 0
      %p138 = por %p136, %p137
      %p139 = scmp.ne.s32.totalorder %s128, %s131
      %p140 = scmp.eq.s32.totalorder %s23, 1
      %p141 = por %p139, %p140
      %p142 = scmp.ne.s32.totalorder %s131, %s132
      %p143 = scmp.eq.s32.totalorder %s23, 0
      %p144 = por %p142, %p143
      %p145 = scmp.ne.s32.totalorder %s131, %s132
      %p146 = scmp.eq.s32.totalorder %s24, 1
      %p147 = por %p145, %p146
      %p149 = scmp.ne.s32.totalorder %s132, %s148
      %p150 = scmp.eq.s32.totalorder %s24, 0
      %p151 = por %p149, %p150
      %p152 = scmp.le.s32.totalorder 1, %s18
      %p153 = scmp.lt.s32.totalorder %s18, 3
      %p154 = pnand %p152, %p153
      %p155 = pneg %p154
      // Predicated region
      $region9: #{tpu_custom_call.1} parent=5 // pred_check
        _
      $region10: #{tpu_custom_call.1} parent=5 // pred_check_branch
        %157 = sbr.rel (%p154) target = $region12
      $region11: #{tpu_custom_call.1} parent=5 // pred_region
        %s158 = ssub.s32 %s18, 1
        // Predicated region
        $region13: #{tpu_custom_call.1} parent=11 // pred_check
          %p159 = pneg %p116
        $region14: #{tpu_custom_call.1} parent=11 // pred_check_branch
          %161 = sbr.rel (%p159) target = $region16
        $region15: #{tpu_custom_call.1} parent=11 // pred_region
          %163 = vsyncadd [#allocation7], 0
          %s164 = sshll.u32 %s2, 4
          %s165 = int_to_ptr.hbm [resolvable:$true] %s164
          %s166 = sshll.u32 [#allocation8], 4
          %s167 = int_to_ptr.vmem [resolvable:$true] %s166
          %172 = dma.hbm_to_vmem [thread:$0]  %s165, 2048, %s167, [#allocation7], 128, 128, 8
        $region16: #{tpu_custom_call.1} parent=11 // pred_fallthru
          _
      $region12: #{tpu_custom_call.1} parent=5 // pred_fallthru
        _
      %p173 = scmp.lt.s32.totalorder %s18, 2
      // Predicated region
      $region17: #{tpu_custom_call.1} parent=5 // pred_check
        %p174 = pneg %p173
      $region18: #{tpu_custom_call.1} parent=5 // pred_check_branch
        %176 = sbr.rel (%p174) target = $region20
      $region19: #{tpu_custom_call.1} parent=5 // pred_region
        // Predicated region
        $region21: #{tpu_custom_call.1} parent=19 // pred_check
          %p177 = pneg %p61
        $region22: #{tpu_custom_call.1} parent=19 // pred_check_branch
          %179 = sbr.rel (%p177) target = $region24
        $region23: #{tpu_custom_call.1} parent=19 // pred_region
          %s180 = sand.u32 %s51, 1
          %s181 = scalar_lea.sflag [#allocation4], %s180
          %s182 = sand.u32 %s51, 1
          %s183 = smul.addr %s182, 128
          %s184 = scalar_lea.vmem [#allocation3], %s183
          %s185 = smul.u32 16, %s26
          %187 = vsyncadd %s181, 0
          %s188 = sadd.s32 %s27, %s185
          %s189 = smul.addr %s25, 16
          %s190 = sadd.s32 %s188, %s189
          %s191 = smul.addr %s190, 8
          %s192 = scalar_lea.hbm %s0, %s191
          %s193 = sshll.u32 %s192, 4
          %s194 = int_to_ptr.hbm [resolvable:$true] %s193
          %s195 = sshll.u32 %s184, 4
          %s196 = int_to_ptr.vmem [resolvable:$true] %s195
          %201 = dma.hbm_to_vmem [thread:$0]  %s194, 2048, %s196, %s181, 128, 128, 8
        $region24: #{tpu_custom_call.1} parent=19 // pred_fallthru
          _
        // Predicated region
        $region25: #{tpu_custom_call.1} parent=19 // pred_check
          %p202 = pneg %p89
        $region26: #{tpu_custom_call.1} parent=19 // pred_check_branch
          %204 = sbr.rel (%p202) target = $region28
        $region27: #{tpu_custom_call.1} parent=19 // pred_region
          %s205 = sand.u32 %s18, 1
          %s206 = scalar_lea.sflag [#allocation7], %s205
          %s207 = sand.u32 %s79, 1
          %s208 = smul.addr %s207, 128
          %s209 = scalar_lea.vmem [#allocation6], %s208
          %s210 = smul.u32 16, %s27
          %212 = vsyncadd %s206, 0
          %s213 = smul.addr %s25, 16
          %s214 = sadd.s32 %s210, %s213
          %s215 = smul.addr %s214, 8
          %s216 = scalar_lea.hbm %s1, %s215
          %s217 = sshll.u32 %s216, 4
          %s218 = int_to_ptr.hbm [resolvable:$true] %s217
          %s219 = sshll.u32 %s209, 4
          %s220 = int_to_ptr.vmem [resolvable:$true] %s219
          %225 = dma.hbm_to_vmem [thread:$0]  %s218, 2048, %s220, %s206, 128, 128, 8
        $region28: #{tpu_custom_call.1} parent=19 // pred_fallthru
          _
      $region20: #{tpu_custom_call.1} parent=5 // pred_fallthru
        _
      %p226 = scmp.le.s32.totalorder 1, %s18
      %p227 = scmp.lt.s32.totalorder %s18, 3
      %p228 = pnand %p226, %p227
      %p229 = pneg %p228
      // Predicated region
      $region29: #{tpu_custom_call.1} parent=5 // pred_check
        _
      $region30: #{tpu_custom_call.1} parent=5 // pred_check_branch
        %231 = sbr.rel (%p228) target = $region32
      $region31: #{tpu_custom_call.1} parent=5 // pred_region
        %s232 = ssub.s32 %s18, 1
        %s233 = sand.u32 %s54, 1
        %s234 = scalar_lea.sflag [#allocation4], %s233
        %s235 = sand.u32 %s54, 1
        %s236 = smul.addr %s235, 128
        %s237 = scalar_lea.vmem [#allocation3], %s236
        // Predicated region
        $region33: #{tpu_custom_call.1} parent=31 // pred_check
          %p238 = pneg %p67
        $region34: #{tpu_custom_call.1} parent=31 // pred_check_branch
          %240 = sbr.rel (%p238) target = $region36
        $region35: #{tpu_custom_call.1} parent=31 // pred_region
          %242 = dma.done %s234, 2048
        $region36: #{tpu_custom_call.1} parent=31 // pred_fallthru
          _
        %s243 = sand.u32 %s23, 1
        %s244 = scalar_lea.sflag [#allocation7], %s243
        %s245 = sand.u32 %s82, 1
        %s246 = smul.addr %s245, 128
        %s247 = scalar_lea.vmem [#allocation6], %s246
        // Predicated region
        $region37: #{tpu_custom_call.1} parent=31 // pred_check
          %p248 = pneg %p95
        $region38: #{tpu_custom_call.1} parent=31 // pred_check_branch
          %250 = sbr.rel (%p248) target = $region40
        $region39: #{tpu_custom_call.1} parent=31 // pred_region
          %252 = dma.done %s244, 2048
        $region40: #{tpu_custom_call.1} parent=31 // pred_fallthru
          _
        // Predicated region
        $region41: #{tpu_custom_call.1} parent=31 // pred_check
          %p253 = pneg %p116
        $region42: #{tpu_custom_call.1} parent=31 // pred_check_branch
          %255 = sbr.rel (%p253) target = $region44
        $region43: #{tpu_custom_call.1} parent=31 // pred_region
          %257 = dma.done [#allocation7], 2048
        $region44: #{tpu_custom_call.1} parent=31 // pred_fallthru
          _
        %s258 = sand.u32 %s54, 1
        %s259 = scalar_lea.sflag [#allocation4], %s258
        %s260 = sand.u32 %s54, 1
        %s261 = smul.addr %s260, 128
        %s262 = scalar_lea.vmem [#allocation3], %s261
        %p263 = pneg %p67
        %p264 = pneg %p64
        %s265 = sand.u32 %s23, 1
        %s266 = scalar_lea.sflag [#allocation7], %s265
        %s267 = sand.u32 %s82, 1
        %s268 = smul.addr %s267, 128
        %s269 = scalar_lea.vmem [#allocation6], %s268
        %p270 = pneg %p95
        %p271 = pneg %p92
        %p272 = pneg %p116
        %p273 = pneg %p113
        %p274 = pneg %p144
        %p275 = pneg %p141
        %s276 = sand.u32 %s131, 1
        %s277 = scalar_lea.sflag [#allocation5], %s276
        %s278 = sand.u32 %s131, 1
        %s279 = smul.addr %s278, 128
        %s280 = scalar_lea.vmem [#allocation9], %s279
        %s281 = smul.u32 16, %s29
        %s282 = smul.u32 16, %s30
        %s283 = smul.u32 16, %s29
        %v284 = vld [vmem:[%s237] sm:$0xff]
        %v285 = vld [vmem:[%s237 + $0x8] sm:$0xff]
        %v286 = vld [vmem:[%s237 + $0x10] sm:$0xff]
        %v287 = vld [vmem:[%s237 + $0x18] sm:$0xff]
        %v288 = vld [vmem:[%s237 + $0x20] sm:$0xff]
        %v289 = vld [vmem:[%s237 + $0x28] sm:$0xff]
        %v290 = vld [vmem:[%s237 + $0x30] sm:$0xff]
        %v291 = vld [vmem:[%s237 + $0x38] sm:$0xff]
        %v292 = vld [vmem:[%s237 + $0x40] sm:$0xff]
        %v293 = vld [vmem:[%s237 + $0x48] sm:$0xff]
        %v294 = vld [vmem:[%s237 + $0x50] sm:$0xff]
        %v295 = vld [vmem:[%s237 + $0x58] sm:$0xff]
        %v296 = vld [vmem:[%s237 + $0x60] sm:$0xff]
        %v297 = vld [vmem:[%s237 + $0x68] sm:$0xff]
        %v298 = vld [vmem:[%s237 + $0x70] sm:$0xff]
        %v299 = vld [vmem:[%s237 + $0x78] sm:$0xff]
        %v300 = vld [vmem:[%s247] sm:$0xff]
        %v301 = vld [vmem:[%s247 + $0x8] sm:$0xff]
        %v302 = vld [vmem:[%s247 + $0x10] sm:$0xff]
        %v303 = vld [vmem:[%s247 + $0x18] sm:$0xff]
        %v304 = vld [vmem:[%s247 + $0x20] sm:$0xff]
        %v305 = vld [vmem:[%s247 + $0x28] sm:$0xff]
        %v306 = vld [vmem:[%s247 + $0x30] sm:$0xff]
        %v307 = vld [vmem:[%s247 + $0x38] sm:$0xff]
        %v308 = vld [vmem:[%s247 + $0x40] sm:$0xff]
        %v309 = vld [vmem:[%s247 + $0x48] sm:$0xff]
        %v310 = vld [vmem:[%s247 + $0x50] sm:$0xff]
        %v311 = vld [vmem:[%s247 + $0x58] sm:$0xff]
        %v312 = vld [vmem:[%s247 + $0x60] sm:$0xff]
        %v313 = vld [vmem:[%s247 + $0x68] sm:$0xff]
        %v314 = vld [vmem:[%s247 + $0x70] sm:$0xff]
        %v315 = vld [vmem:[%s247 + $0x78] sm:$0xff]
        %316 = vmatpush.msra.mxu0 %v315
        %317 = vmatpush.msra.mxu0 %v314
        %318 = vmatpush.msra.mxu0 %v313
        %319 = vmatpush.msra.mxu0 %v312
        %320 = vmatpush.msra.mxu0 %v311
        %321 = vmatpush.msra.mxu0 %v310
        %322 = vmatpush.msra.mxu0 %v309
        %323 = vmatpush.msra.mxu0 %v308
        %324 = vmatpush.msra.mxu0 %v307
        %325 = vmatpush.msra.mxu0 %v306
        %326 = vmatpush.msra.mxu0 %v305
        %327 = vmatpush.msra.mxu0 %v304
        %328 = vmatpush.msra.mxu0 %v303
        %329 = vmatpush.msra.mxu0 %v302
        %330 = vmatpush.msra.mxu0 %v301
        %331 = vmatpush.msra.mxu0 %v300
        %332 = vmatmul.f32.gmra.mxu0 %v284
        %v333 = vpop.f32.mrf.mxu0
        %v334 = vadd.f32 0.0, %v333
        %335 = vmatmul.f32.gmra.mxu0 %v285
        %v336 = vpop.f32.mrf.mxu0
        %v337 = vadd.f32 0.0, %v336
        %338 = vmatmul.f32.gmra.mxu0 %v286
        %v339 = vpop.f32.mrf.mxu0
        %v340 = vadd.f32 0.0, %v339
        %341 = vmatmul.f32.gmra.mxu0 %v287
        %v342 = vpop.f32.mrf.mxu0
        %v343 = vadd.f32 0.0, %v342
        %344 = vmatmul.f32.gmra.mxu0 %v288
        %v345 = vpop.f32.mrf.mxu0
        %v346 = vadd.f32 0.0, %v345
        %347 = vmatmul.f32.gmra.mxu0 %v289
        %v348 = vpop.f32.mrf.mxu0
        %v349 = vadd.f32 0.0, %v348
        %350 = vmatmul.f32.gmra.mxu0 %v290
        %v351 = vpop.f32.mrf.mxu0
        %v352 = vadd.f32 0.0, %v351
        %353 = vmatmul.f32.gmra.mxu0 %v291
        %v354 = vpop.f32.mrf.mxu0
        %v355 = vadd.f32 0.0, %v354
        %356 = vmatmul.f32.gmra.mxu0 %v292
        %v357 = vpop.f32.mrf.mxu0
        %v358 = vadd.f32 0.0, %v357
        %359 = vmatmul.f32.gmra.mxu0 %v293
        %v360 = vpop.f32.mrf.mxu0
        %v361 = vadd.f32 0.0, %v360
        %362 = vmatmul.f32.gmra.mxu0 %v294
        %v363 = vpop.f32.mrf.mxu0
        %v364 = vadd.f32 0.0, %v363
        %365 = vmatmul.f32.gmra.mxu0 %v295
        %v366 = vpop.f32.mrf.mxu0
        %v367 = vadd.f32 0.0, %v366
        %368 = vmatmul.f32.gmra.mxu0 %v296
        %v369 = vpop.f32.mrf.mxu0
        %v370 = vadd.f32 0.0, %v369
        %371 = vmatmul.f32.gmra.mxu0 %v297
        %v372 = vpop.f32.mrf.mxu0
        %v373 = vadd.f32 0.0, %v372
        %374 = vmatmul.f32.gmra.mxu0 %v298
        %v375 = vpop.f32.mrf.mxu0
        %v376 = vadd.f32 0.0, %v375
        %377 = vmatmul.f32.gmra.mxu0 %v299
        %v378 = vpop.f32.mrf.mxu0
        %v379 = vadd.f32 0.0, %v378
        %380 = vdwg.mxu0
        %p381 = scmp.eq.s32.totalorder %s30, 0
        // Predicated region
        $region45: #{tpu_custom_call.1} parent=31 // pred_check
          %p382 = pneg %p381
        $region46: #{tpu_custom_call.1} parent=31 // pred_check_branch
          %384 = sbr.rel (%p382) target = $region48
        $region47: #{tpu_custom_call.1} parent=31 // pred_region
          %385 = vst [vmem:[#allocation2] sm:$0xff] 0.0
          %386 = vst [vmem:[#allocation2 + $0x8] sm:$0xff] 0.0
          %387 = vst [vmem:[#allocation2 + $0x10] sm:$0xff] 0.0
          %388 = vst [vmem:[#allocation2 + $0x18] sm:$0xff] 0.0
          %389 = vst [vmem:[#allocation2 + $0x20] sm:$0xff] 0.0
          %390 = vst [vmem:[#allocation2 + $0x28] sm:$0xff] 0.0
          %391 = vst [vmem:[#allocation2 + $0x30] sm:$0xff] 0.0
          %392 = vst [vmem:[#allocation2 + $0x38] sm:$0xff] 0.0
          %393 = vst [vmem:[#allocation2 + $0x40] sm:$0xff] 0.0
          %394 = vst [vmem:[#allocation2 + $0x48] sm:$0xff] 0.0
          %395 = vst [vmem:[#allocation2 + $0x50] sm:$0xff] 0.0
          %396 = vst [vmem:[#allocation2 + $0x58] sm:$0xff] 0.0
          %397 = vst [vmem:[#allocation2 + $0x60] sm:$0xff] 0.0
          %398 = vst [vmem:[#allocation2 + $0x68] sm:$0xff] 0.0
          %399 = vst [vmem:[#allocation2 + $0x70] sm:$0xff] 0.0
          %400 = vst [vmem:[#allocation2 + $0x78] sm:$0xff] 0.0
        $region48: #{tpu_custom_call.1} parent=31 // pred_fallthru
          _
        %v401 = vld [vmem:[#allocation2] sm:$0xff]
        %v402 = vld [vmem:[#allocation2 + $0x8] sm:$0xff]
        %v403 = vld [vmem:[#allocation2 + $0x10] sm:$0xff]
        %v404 = vld [vmem:[#allocation2 + $0x18] sm:$0xff]
        %v405 = vld [vmem:[#allocation2 + $0x20] sm:$0xff]
        %v406 = vld [vmem:[#allocation2 + $0x28] sm:$0xff]
        %v407 = vld [vmem:[#allocation2 + $0x30] sm:$0xff]
        %v408 = vld [vmem:[#allocation2 + $0x38] sm:$0xff]
        %v409 = vld [vmem:[#allocation2 + $0x40] sm:$0xff]
        %v410 = vld [vmem:[#allocation2 + $0x48] sm:$0xff]
        %v411 = vld [vmem:[#allocation2 + $0x50] sm:$0xff]
        %v412 = vld [vmem:[#allocation2 + $0x58] sm:$0xff]
        %v413 = vld [vmem:[#allocation2 + $0x60] sm:$0xff]
        %v414 = vld [vmem:[#allocation2 + $0x68] sm:$0xff]
        %v415 = vld [vmem:[#allocation2 + $0x70] sm:$0xff]
        %v416 = vld [vmem:[#allocation2 + $0x78] sm:$0xff]
        %v417 = vadd.f32 %v401, %v334
        %v418 = vadd.f32 %v402, %v337
        %v419 = vadd.f32 %v403, %v340
        %v420 = vadd.f32 %v404, %v343
        %v421 = vadd.f32 %v405, %v346
        %v422 = vadd.f32 %v406, %v349
        %v423 = vadd.f32 %v407, %v352
        %v424 = vadd.f32 %v408, %v355
        %v425 = vadd.f32 %v409, %v358
        %v426 = vadd.f32 %v410, %v361
        %v427 = vadd.f32 %v411, %v364
        %v428 = vadd.f32 %v412, %v367
        %v429 = vadd.f32 %v413, %v370
        %v430 = vadd.f32 %v414, %v373
        %v431 = vadd.f32 %v415, %v376
        %v432 = vadd.f32 %v416, %v379
        %433 = vst [vmem:[#allocation2] sm:$0xff] %v417
        %434 = vst [vmem:[#allocation2 + $0x8] sm:$0xff] %v418
        %435 = vst [vmem:[#allocation2 + $0x10] sm:$0xff] %v419
        %436 = vst [vmem:[#allocation2 + $0x18] sm:$0xff] %v420
        %437 = vst [vmem:[#allocation2 + $0x20] sm:$0xff] %v421
        %438 = vst [vmem:[#allocation2 + $0x28] sm:$0xff] %v422
        %439 = vst [vmem:[#allocation2 + $0x30] sm:$0xff] %v423
        %440 = vst [vmem:[#allocation2 + $0x38] sm:$0xff] %v424
        %441 = vst [vmem:[#allocation2 + $0x40] sm:$0xff] %v425
        %442 = vst [vmem:[#allocation2 + $0x48] sm:$0xff] %v426
        %443 = vst [vmem:[#allocation2 + $0x50] sm:$0xff] %v427
        %444 = vst [vmem:[#allocation2 + $0x58] sm:$0xff] %v428
        %445 = vst [vmem:[#allocation2 + $0x60] sm:$0xff] %v429
        %446 = vst [vmem:[#allocation2 + $0x68] sm:$0xff] %v430
        %447 = vst [vmem:[#allocation2 + $0x70] sm:$0xff] %v431
        %448 = vst [vmem:[#allocation2 + $0x78] sm:$0xff] %v432
        // Predicated region
        $region49: #{tpu_custom_call.1} parent=31 // pred_check
          %p449 = pneg %p381
        $region50: #{tpu_custom_call.1} parent=31 // pred_check_branch
          %451 = sbr.rel (%p449) target = $region52
        $region51: #{tpu_custom_call.1} parent=31 // pred_region
          %v452 = vld [vmem:[#allocation2] sm:$0xff]
          %v453 = vld [vmem:[#allocation2 + $0x8] sm:$0xff]
          %v454 = vld [vmem:[#allocation2 + $0x10] sm:$0xff]
          %v455 = vld [vmem:[#allocation2 + $0x18] sm:$0xff]
          %v456 = vld [vmem:[#allocation2 + $0x20] sm:$0xff]
          %v457 = vld [vmem:[#allocation2 + $0x28] sm:$0xff]
          %v458 = vld [vmem:[#allocation2 + $0x30] sm:$0xff]
          %v459 = vld [vmem:[#allocation2 + $0x38] sm:$0xff]
          %v460 = vld [vmem:[#allocation2 + $0x40] sm:$0xff]
          %v461 = vld [vmem:[#allocation2 + $0x48] sm:$0xff]
          %v462 = vld [vmem:[#allocation2 + $0x50] sm:$0xff]
          %v463 = vld [vmem:[#allocation2 + $0x58] sm:$0xff]
          %v464 = vld [vmem:[#allocation2 + $0x60] sm:$0xff]
          %v465 = vld [vmem:[#allocation2 + $0x68] sm:$0xff]
          %v466 = vld [vmem:[#allocation2 + $0x70] sm:$0xff]
          %v467 = vld [vmem:[#allocation2 + $0x78] sm:$0xff]
          %v468 = vld [vmem:[#allocation8] sm:$0xff]
          %v469 = vld [vmem:[#allocation8 + $0x8] sm:$0xff]
          %v470 = vld [vmem:[#allocation8 + $0x10] sm:$0xff]
          %v471 = vld [vmem:[#allocation8 + $0x18] sm:$0xff]
          %v472 = vld [vmem:[#allocation8 + $0x20] sm:$0xff]
          %v473 = vld [vmem:[#allocation8 + $0x28] sm:$0xff]
          %v474 = vld [vmem:[#allocation8 + $0x30] sm:$0xff]
          %v475 = vld [vmem:[#allocation8 + $0x38] sm:$0xff]
          %v476 = vld [vmem:[#allocation8 + $0x40] sm:$0xff]
          %v477 = vld [vmem:[#allocation8 + $0x48] sm:$0xff]
          %v478 = vld [vmem:[#allocation8 + $0x50] sm:$0xff]
          %v479 = vld [vmem:[#allocation8 + $0x58] sm:$0xff]
          %v480 = vld [vmem:[#allocation8 + $0x60] sm:$0xff]
          %v481 = vld [vmem:[#allocation8 + $0x68] sm:$0xff]
          %v482 = vld [vmem:[#allocation8 + $0x70] sm:$0xff]
          %v483 = vld [vmem:[#allocation8 + $0x78] sm:$0xff]
          %484 = vmatpush.msra.mxu0 %v483
          %485 = vmatpush.msra.mxu0 %v482
          %486 = vmatpush.msra.mxu0 %v481
          %487 = vmatpush.msra.mxu0 %v480
          %488 = vmatpush.msra.mxu0 %v479
          %489 = vmatpush.msra.mxu0 %v478
          %490 = vmatpush.msra.mxu0 %v477
          %491 = vmatpush.msra.mxu0 %v476
          %492 = vmatpush.msra.mxu0 %v475
          %493 = vmatpush.msra.mxu0 %v474
          %494 = vmatpush.msra.mxu0 %v473
          %495 = vmatpush.msra.mxu0 %v472
          %496 = vmatpush.msra.mxu0 %v471
          %497 = vmatpush.msra.mxu0 %v470
          %498 = vmatpush.msra.mxu0 %v469
          %499 = vmatpush.msra.mxu0 %v468
          %500 = vmatmul.f32.gmra.mxu0 %v452
          %v501 = vpop.f32.mrf.mxu0
          %v502 = vadd.f32 0.0, %v501
          %503 = vmatmul.f32.gmra.mxu0 %v453
          %v504 = vpop.f32.mrf.mxu0
          %v505 = vadd.f32 0.0, %v504
          %506 = vmatmul.f32.gmra.mxu0 %v454
          %v507 = vpop.f32.mrf.mxu0
          %v508 = vadd.f32 0.0, %v507
          %509 = vmatmul.f32.gmra.mxu0 %v455
          %v510 = vpop.f32.mrf.mxu0
          %v511 = vadd.f32 0.0, %v510
          %512 = vmatmul.f32.gmra.mxu0 %v456
          %v513 = vpop.f32.mrf.mxu0
          %v514 = vadd.f32 0.0, %v513
          %515 = vmatmul.f32.gmra.mxu0 %v457
          %v516 = vpop.f32.mrf.mxu0
          %v517 = vadd.f32 0.0, %v516
          %518 = vmatmul.f32.gmra.mxu0 %v458
          %v519 = vpop.f32.mrf.mxu0
          %v520 = vadd.f32 0.0, %v519
          %521 = vmatmul.f32.gmra.mxu0 %v459
          %v522 = vpop.f32.mrf.mxu0
          %v523 = vadd.f32 0.0, %v522
          %524 = vmatmul.f32.gmra.mxu0 %v460
          %v525 = vpop.f32.mrf.mxu0
          %v526 = vadd.f32 0.0, %v525
          %527 = vmatmul.f32.gmra.mxu0 %v461
          %v528 = vpop.f32.mrf.mxu0
          %v529 = vadd.f32 0.0, %v528
          %530 = vmatmul.f32.gmra.mxu0 %v462
          %v531 = vpop.f32.mrf.mxu0
          %v532 = vadd.f32 0.0, %v531
          %533 = vmatmul.f32.gmra.mxu0 %v463
          %v534 = vpop.f32.mrf.mxu0
          %v535 = vadd.f32 0.0, %v534
          %536 = vmatmul.f32.gmra.mxu0 %v464
          %v537 = vpop.f32.mrf.mxu0
          %v538 = vadd.f32 0.0, %v537
          %539 = vmatmul.f32.gmra.mxu0 %v465
          %v540 = vpop.f32.mrf.mxu0
          %v541 = vadd.f32 0.0, %v540
          %542 = vmatmul.f32.gmra.mxu0 %v466
          %v543 = vpop.f32.mrf.mxu0
          %v544 = vadd.f32 0.0, %v543
          %545 = vmatmul.f32.gmra.mxu0 %v467
          %v546 = vpop.f32.mrf.mxu0
          %v547 = vadd.f32 0.0, %v546
          %548 = vdwg.mxu0
          %549 = vst [vmem:[%s280] sm:$0xff] %v502
          %550 = vst [vmem:[%s280 + $0x8] sm:$0xff] %v505
          %551 = vst [vmem:[%s280 + $0x10] sm:$0xff] %v508
          %552 = vst [vmem:[%s280 + $0x18] sm:$0xff] %v511
          %553 = vst [vmem:[%s280 + $0x20] sm:$0xff] %v514
          %554 = vst [vmem:[%s280 + $0x28] sm:$0xff] %v517
          %555 = vst [vmem:[%s280 + $0x30] sm:$0xff] %v520
          %556 = vst [vmem:[%s280 + $0x38] sm:$0xff] %v523
          %557 = vst [vmem:[%s280 + $0x40] sm:$0xff] %v526
          %558 = vst [vmem:[%s280 + $0x48] sm:$0xff] %v529
          %559 = vst [vmem:[%s280 + $0x50] sm:$0xff] %v532
          %560 = vst [vmem:[%s280 + $0x58] sm:$0xff] %v535
          %561 = vst [vmem:[%s280 + $0x60] sm:$0xff] %v538
          %562 = vst [vmem:[%s280 + $0x68] sm:$0xff] %v541
          %563 = vst [vmem:[%s280 + $0x70] sm:$0xff] %v544
          %564 = vst [vmem:[%s280 + $0x78] sm:$0xff] %v547
        $region52: #{tpu_custom_call.1} parent=31 // pred_fallthru
          _
        %s565 = sand.u32 %s131, 1
        %s566 = scalar_lea.sflag [#allocation5], %s565
        %s567 = sand.u32 %s131, 1
        %s568 = smul.addr %s567, 128
        %s569 = scalar_lea.vmem [#allocation9], %s568
        // Predicated region
        $region53: #{tpu_custom_call.1} parent=31 // pred_check
          %p570 = pneg %p141
        $region54: #{tpu_custom_call.1} parent=31 // pred_check_branch
          %572 = sbr.rel (%p570) target = $region56
        $region55: #{tpu_custom_call.1} parent=31 // pred_region
          %s573 = smul.u32 16, %s29
          %575 = vsyncadd %s566, 0
          %s576 = smul.addr %s28, 16
          %s577 = sadd.s32 %s573, %s576
          %s578 = smul.addr %s577, 8
          %s579 = scalar_lea.hbm %s3, %s578
          %s580 = sshll.u32 %s569, 4
          %s581 = int_to_ptr.vmem [resolvable:$true] %s580
          %s582 = sshll.u32 %s579, 4
          %s583 = int_to_ptr.hbm [resolvable:$true] %s582
          %588 = dma.vmem_to_hbm [thread:$0]  %s581, 2048, %s583, %s566, 128, 128, 8
        $region56: #{tpu_custom_call.1} parent=31 // pred_fallthru
          _
      $region32: #{tpu_custom_call.1} parent=5 // pred_fallthru
        _
      %p589 = scmp.le.s32.totalorder 2, %s18
      // Predicated region
      $region57: #{tpu_custom_call.1} parent=5 // pred_check
        %p590 = pneg %p589
      $region58: #{tpu_custom_call.1} parent=5 // pred_check_branch
        %592 = sbr.rel (%p590) target = $region60
      $region59: #{tpu_custom_call.1} parent=5 // pred_region
        %s593 = ssub.s32 %s18, 2
        // Predicated region
        $region61: #{tpu_custom_call.1} parent=59 // pred_check
          %p594 = pneg %p147
        $region62: #{tpu_custom_call.1} parent=59 // pred_check_branch
          %596 = sbr.rel (%p594) target = $region64
        $region63: #{tpu_custom_call.1} parent=59 // pred_region
          %s597 = sand.u32 %s132, 1
          %s598 = scalar_lea.sflag [#allocation5], %s597
          %s599 = sand.u32 %s132, 1
          %s600 = smul.addr %s599, 128
          %s601 = scalar_lea.vmem [#allocation9], %s600
          %603 = dma.done %s598, 2048
        $region64: #{tpu_custom_call.1} parent=59 // pred_fallthru
          _
      $region60: #{tpu_custom_call.1} parent=5 // pred_fallthru
        _
    $region6: #{tpu_custom_call.1} parent=1 // loop_footer
      %s22 = sadd.s32 1, %s18
    $region7: #{tpu_custom_call.1} parent=1 // loop_footer_branch
      %17 = sbr.rel target = $region3
    $region8: #{tpu_custom_call.1} parent=1 // loop_exit
      _
    %604 = vsyncpa [#allocation4], 1
    %s605 = scalar_lea.sflag [#allocation4], 1
    %606 = vsyncpa %s605, 1
    %607 = vsyncpa [#allocation7], 1
    %s608 = scalar_lea.sflag [#allocation7], 1
    %609 = vsyncpa %s608, 1
    %610 = vsyncpa [#allocation5], 1
    %s611 = scalar_lea.sflag [#allocation5], 1
    %612 = vsyncpa %s611, 1

</llo_original>
